<compile_context>
chip_gen: v5e
topology: v5e:2x2
jax: 0.10.0
libtpu: 0.0.40
codegen_flags: <defaults>
</compile_context>

<pallas_src>
import functools

import jax
import jax.numpy as jnp
from jax import lax
from jax.experimental import pallas as pl
from jax.experimental.pallas import tpu as pltpu

_LANES = 128
_SUBLANES = 8
_TILE = _SUBLANES * _LANES   # 1024


def _round_up(x, m):
    return (x + m - 1) // m * m


def _default_num_splits():
    # The 2-way "parallel" split only pays off on dual-TensorCore chips (v7x);
    # on single-TC chips (v5e/v6e) it just adds an index-map clamp and a
    # possible wasted overshoot DMA of one block.
    try:
        kind = jax.devices()[0].device_kind.lower()
    except Exception:
        return 1
    return 2 if "v7" in kind else 1


def _focal_loss_kernel(p_ref, t_ref, out_ref, acc_ref, *, alpha, gamma,
                       rows_valid, total_blocks, binary_targets):
    c = pl.program_id(0)          # split ("parallel") axis — megacore on v7x
    i = pl.program_id(1)          # tile ("arbitrary") reduction axis
    n_inner = pl.num_programs(1)
    blk = c * n_inner + i         # logical block id over the row dimension

    @pl.when(i == 0)
    def _():
        acc_ref[...] = jnp.zeros_like(acc_ref)

    # Stream in native dtype, cast on-chip (hidden under DMA).
    p = p_ref[...].astype(jnp.float32)
    t = t_ref[...].astype(jnp.float32)

    if binary_targets:
        # Targets in {0,1} (matches the module's targets.long() alpha gather):
        # pt is p or 1-p directly -> single log, no exp; PyTorch's log clamp at
        # -100 becomes a min at 100.
        pt = jnp.where(t >= 1.0, p, 1.0 - p)
        bce = jnp.minimum(-jnp.log(jnp.maximum(pt, 1e-45)), 100.0)
    else:
        # Soft-target fallback: full BCE with PyTorch's log clamp.
        log_p = jnp.maximum(jnp.log(p), -100.0)
        log_1mp = jnp.maximum(jnp.log(1.0 - p), -100.0)
        bce = -(t * log_p + (1.0 - t) * log_1mp)
        pt = jnp.exp(-bce)

    # at = alpha_table.gather(0, targets.long()); table = [1-alpha, alpha].
    # .long() truncates toward zero, so any target < 1 selects (1 - alpha).
    at = jnp.where(t >= 1.0, jnp.float32(alpha), jnp.float32(1.0 - alpha))

    # (1 - pt) ** gamma: repeated multiply for small integer gamma (no pow ->
    # log+exp on the EUP); base clamped >= 0 against numeric overshoot.
    u = jnp.maximum(1.0 - pt, 0.0)
    g = float(gamma)
    if g.is_integer() and 0.0 <= g <= 16.0:
        gi = int(g)
        mod = jnp.ones_like(u) if gi == 0 else u
        for _ in range(max(gi - 1, 0)):
            mod = mod * u
    else:
        mod = u ** g

    f = at * mod * bce            # (tm, 128) f32 per-element loss

    tm = p_ref.shape[0]

    def fold(v):
        # (tm,128) -> (8,128): sublane-aligned reshape + leading-axis sum,
        # pure VPU adds (no per-tile cross-lane XLU reduce).
        return jnp.sum(v.reshape(tm // _SUBLANES, _SUBLANES, _LANES), axis=0)

    last_needs_mask = (rows_valid % tm) != 0
    hot_limit = total_blocks - 1 if last_needs_mask else total_blocks

    # Hot path: full blocks, no masking (zero-padded elements contribute 0).
    @pl.when(blk < hot_limit)
    def _():
        acc_ref[...] += fold(f)

    if last_needs_mask:
        # Cold path: only the final block overhangs the row extent; mask its
        # garbage rows with block-local int32 row indices.
        @pl.when(blk == total_blocks - 1)
        def _():
            row = blk * tm + lax.broadcasted_iota(jnp.int32, f.shape, 0)
            acc_ref[...] += fold(jnp.where(row < rows_valid, f, 0.0))

    # Overshooting splits (blk >= total_blocks; the clamped index_map re-reads
    # the last real block) match neither branch -> never double counted.

    @pl.when(i == n_inner - 1)
    def _():
        out_ref[...] = acc_ref[...]   # lane-dense (8,128) store per split


def weighted_focal_loss(inputs, targets, *, alpha=0.25, gamma=2.0,
                        binary_targets=True, max_block_rows=2048,
                        num_splits=None):
    """Focal loss over the flattened inputs/targets; returns a scalar f32 mean."""
    p = jnp.ravel(inputs)
    t = jnp.ravel(targets)
    n = p.shape[0]

    # Lane alignment: only copy (pad) when n is not already a multiple of 128
    # (or tiny); reshaping a contiguous flat array to (rows, 128) is free.
    if n % _LANES == 0 and n >= _TILE:
        n_pad = n
    else:
        # TODO(synk): a fully copy-free ragged path would need a manual-DMA
        # (pl.ANY) tail kernel; this pad copies both inputs once.
        n_pad = max(_round_up(n, _TILE), _TILE)
    pad = n_pad - n
    if pad:
        p = jnp.pad(p, (0, pad))
        t = jnp.pad(t, (0, pad))

    rows = n_pad // _LANES                               # >= 8
    # Balanced row-tile: multiple of 8, <= rows, <= max_block_rows, sized so
    # the last block's overhang (masked, cold) is as small as possible.
    tb0 = pl.cdiv(rows, max_block_rows)
    tm = min((rows // _SUBLANES) * _SUBLANES,
             _round_up(pl.cdiv(rows, tb0), _SUBLANES))
    total_blocks = pl.cdiv(rows, tm)

    if num_splits is None:
        num_splits = _default_num_splits()
    nsplit = max(1, min(int(num_splits), total_blocks))
    bps = pl.cdiv(total_blocks, nsplit)                  # blocks per split

    p2 = p.reshape(rows, _LANES)
    t2 = t.reshape(rows, _LANES)

    if nsplit * bps == total_blocks:
        def in_index(c, i):
            return (c * bps + i, 0)
    else:
        def in_index(c, i):
            # Overshooting positions re-read the last real block; the kernel's
            # scalar pl.when guard skips their accumulation.
            return (jnp.minimum(c * bps + i, total_blocks - 1), 0)

    # NOTE: n/rows are static here (JAX retraces on shape change anyway), so a
    # scalar-prefetch n operand would not avoid recompiles in practice.
    kernel = functools.partial(
        _focal_loss_kernel, alpha=float(alpha), gamma=float(gamma),
        rows_valid=rows, total_blocks=total_blocks,
        binary_targets=bool(binary_targets))

    partials = pl.pallas_call(
        kernel,
        out_shape=jax.ShapeDtypeStruct((nsplit * _SUBLANES, _LANES), jnp.float32),
        grid=(nsplit, bps),
        in_specs=[
            pl.BlockSpec((tm, _LANES), in_index),
            pl.BlockSpec((tm, _LANES), in_index),
        ],
        out_specs=pl.BlockSpec((_SUBLANES, _LANES), lambda c, i: (c, 0)),
        scratch_shapes=[pltpu.VMEM((_SUBLANES, _LANES), jnp.float32)],
        compiler_params=pltpu.CompilerParams(
            dimension_semantics=("parallel", "arbitrary")),
    )(p2, t2)

    # Final cross-lane reduce of the per-split (8,128) partial sums.
    return jnp.sum(partials) / jnp.float32(n)


def _reference(inputs, targets, alpha=0.25, gamma=2.0):
    p = jnp.ravel(inputs).astype(jnp.float32)
    t = jnp.ravel(targets).astype(jnp.float32)
    log_p = jnp.maximum(jnp.log(p), -100.0)
    log_1mp = jnp.maximum(jnp.log(1.0 - p), -100.0)
    bce = -(t * log_p + (1.0 - t) * log_1mp)
    pt = jnp.exp(-bce)
    at = jnp.where(t >= 1.0, alpha, 1.0 - alpha)   # targets.long() truncation
    return jnp.mean(at * (1.0 - pt) ** gamma * bce)


if __name__ == "__main__":
    key = jax.random.PRNGKey(0)
    k1, k2, k3, k4, k5, k6 = jax.random.split(key, 6)

    # Module-shaped example: probabilities / binary targets, shape (2, 4, 16, 16).
    shape = (2, 4, 16, 16)
    inputs = jax.nn.sigmoid(jax.random.normal(k1, shape, dtype=jnp.float32))
    targets = (jax.random.uniform(k2, shape) > 0.5).astype(jnp.float32)
    loss = jax.block_until_ready(weighted_focal_loss(inputs, targets,
                                                     alpha=0.25, gamma=2.0))
    ref = _reference(inputs, targets, alpha=0.25, gamma=2.0)
    assert jnp.allclose(loss, ref, rtol=1e-5, atol=1e-5), (loss, ref)

    # Ragged size: exercises the (tiny) tail pad + single-block path.
    n2 = 3003
    p_r = jax.nn.sigmoid(jax.random.normal(k3, (n2,), dtype=jnp.float32))
    t_r = (jax.random.uniform(k4, (n2,)) > 0.5).astype(jnp.float32)
    loss2 = jax.block_until_ready(weighted_focal_loss(p_r, t_r))
    ref2 = _reference(p_r, t_r)
    assert jnp.allclose(loss2, ref2, rtol=1e-5, atol=1e-5), (loss2, ref2)

    # Multi-tile, 128-aligned (no pad copy), rows not a multiple of the tile:
    # exercises the pipelined reduction + masked final block.
    n3 = 2100 * 128
    p_m = jax.nn.sigmoid(jax.random.normal(k3, (n3,), dtype=jnp.float32))
    t_m = (jax.random.uniform(k4, (n3,)) > 0.5).astype(jnp.float32)
    loss3 = jax.block_until_ready(weighted_focal_loss(p_m, t_m))
    ref3 = _reference(p_m, t_m)
    assert jnp.allclose(loss3, ref3, rtol=1e-5, atol=1e-5), (loss3, ref3)

    # Forced 2-way split with an odd block count: exercises the overshoot
    # guard (clamped index_map + scalar pl.when) and the masked final block.
    loss4 = jax.block_until_ready(
        weighted_focal_loss(p_m, t_m, max_block_rows=256, num_splits=2))
    assert jnp.allclose(loss4, ref3, rtol=1e-5, atol=1e-5), (loss4, ref3)

    # Soft-target fallback path (keeps the full 2-log + exp BCE math).
    p_s = jax.nn.sigmoid(jax.random.normal(k5, (4, 64), dtype=jnp.float32))
    t_s = jax.random.uniform(k6, (4, 64), dtype=jnp.float32)
    loss5 = jax.block_until_ready(
        weighted_focal_loss(p_s, t_s, binary_targets=False))
    ref5 = _reference(p_s, t_s)
    assert jnp.allclose(loss5, ref5, rtol=1e-5, atol=1e-5), (loss5, ref5)

    print("KERNEL_OK")
</pallas_src>

<mosaic_0001>
module attributes {stable_mosaic.version = 11 : i64} {
  func.func @_focal_loss_kernel(%arg0: i32, %arg1: i32, %arg2: memref<16x128xf32, #tpu.memory_space<vmem>>, %arg3: memref<16x128xf32, #tpu.memory_space<vmem>>, %arg4: memref<8x128xf32, #tpu.memory_space<vmem>>, %arg5: memref<8x128xf32, #tpu.memory_space<vmem>>) attributes {dimension_semantics = [#tpu.dimension_semantics<parallel>, #tpu.dimension_semantics<arbitrary>], iteration_bounds = array<i64: 1, 1>, scalar_prefetch = 0 : i64, scratch_operands = 1 : i64, tpu.core_type = #tpu.core_type<tc>, window_params = [{transform_indices = @transform_0, window_bounds = array<i64: 16, 128>}, {transform_indices = @transform_1, window_bounds = array<i64: 16, 128>}, {transform_indices = @transform_2, window_bounds = array<i64: 8, 128>}]} {
    %c1_i32 = arith.constant 1 : i32
    %0 = arith.muli %arg0, %c1_i32 : i32
    %1 = arith.addi %0, %arg1 : i32
    %c0_i32 = arith.constant 0 : i32
    %2 = arith.cmpi eq, %arg1, %c0_i32 : i32
    %3 = arith.extui %2 : i1 to i32
    %c0_i32_0 = arith.constant 0 : i32
    %4 = arith.cmpi ne, %3, %c0_i32_0 : i32
    scf.if %4 {
      %cst_17 = arith.constant 0.000000e+00 : f32
      %37 = vector.broadcast %cst_17 : f32 to vector<8x128xf32>
      %c0_18 = arith.constant 0 : index
      %c0_19 = arith.constant 0 : index
      %38 = vector.load %arg5[%c0_18, %c0_19] : memref<8x128xf32, #tpu.memory_space<vmem>>, vector<8x128xf32>
      tpu.vector_store %arg5[%c0_18, %c0_19], %37 {strides = array<i32>} : memref<8x128xf32, #tpu.memory_space<vmem>>, vector<8x128xf32>,
    } else {
    }
    %c0 = arith.constant 0 : index
    %c0_1 = arith.constant 0 : index
    %5 = vector.load %arg2[%c0, %c0_1] : memref<16x128xf32, #tpu.memory_space<vmem>>, vector<16x128xf32>
    %c0_2 = arith.constant 0 : index
    %c0_3 = arith.constant 0 : index
    %6 = vector.load %arg3[%c0_2, %c0_3] : memref<16x128xf32, #tpu.memory_space<vmem>>, vector<16x128xf32>
    %cst = arith.constant 1.000000e+00 : f32
    %7 = vector.broadcast %cst : f32 to vector<16x128xf32>
    %8 = arith.cmpf oge, %6, %7 : vector<16x128xf32>
    %cst_4 = arith.constant 1.000000e+00 : f32
    %9 = vector.broadcast %cst_4 : f32 to vector<16x128xf32>
    %10 = arith.subf %9, %5 : vector<16x128xf32>
    %11 = arith.select %8, %5, %10 : vector<16x128xi1>, vector<16x128xf32>
    %cst_5 = arith.constant 1.401300e-45 : f32
    %12 = vector.broadcast %cst_5 : f32 to vector<16x128xf32>
    %13 = arith.maximumf %11, %12 : vector<16x128xf32>
    %14 = math.log %13 : vector<16x128xf32>
    %cst_6 = arith.constant 0.000000e+00 : f32
    %15 = vector.broadcast %cst_6 : f32 to vector<16x128xf32>
    %16 = arith.subf %15, %14 : vector<16x128xf32>
    %cst_7 = arith.constant 1.000000e+02 : f32
    %17 = vector.broadcast %cst_7 : f32 to vector<16x128xf32>
    %18 = arith.minimumf %16, %17 : vector<16x128xf32>
    %cst_8 = arith.constant 1.000000e+00 : f32
    %19 = vector.broadcast %cst_8 : f32 to vector<16x128xf32>
    %20 = arith.cmpf oge, %6, %19 : vector<16x128xf32>
    %cst_9 = arith.constant 2.500000e-01 : f32
    %cst_10 = arith.constant 7.500000e-01 : f32
    %21 = vector.broadcast %cst_9 : f32 to vector<16x128xf32>
    %22 = vector.broadcast %cst_10 : f32 to vector<16x128xf32>
    %23 = arith.select %20, %21, %22 : vector<16x128xi1>, vector<16x128xf32>
    %cst_11 = arith.constant 1.000000e+00 : f32
    %24 = vector.broadcast %cst_11 : f32 to vector<16x128xf32>
    %25 = arith.subf %24, %11 : vector<16x128xf32>
    %cst_12 = arith.constant 0.000000e+00 : f32
    %26 = vector.broadcast %cst_12 : f32 to vector<16x128xf32>
    %27 = arith.maximumf %25, %26 : vector<16x128xf32>
    %28 = arith.mulf %27, %27 : vector<16x128xf32>
    %29 = arith.mulf %23, %28 : vector<16x128xf32>
    %30 = arith.mulf %29, %18 : vector<16x128xf32>
    %c1_i32_13 = arith.constant 1 : i32
    %31 = arith.cmpi slt, %1, %c1_i32_13 : i32
    %32 = arith.extui %31 : i1 to i32
    %c0_i32_14 = arith.constant 0 : i32
    %33 = arith.cmpi ne, %32, %c0_i32_14 : i32
    scf.if %33 {
      %c0_17 = arith.constant 0 : index
      %c0_18 = arith.constant 0 : index
      %37 = vector.load %arg5[%c0_17, %c0_18] : memref<8x128xf32, #tpu.memory_space<vmem>>, vector<8x128xf32>
      %38 = vector.shape_cast %30 : vector<16x128xf32> to vector<2x8x128xf32>
      %cst_19 = arith.constant dense<0.000000e+00> : vector<8x128xf32>
      %39 = vector.multi_reduction <add>, %38, %cst_19 [0] : vector<2x8x128xf32> to vector<8x128xf32>
      %40 = arith.addf %37, %39 : vector<8x128xf32>
      %c0_20 = arith.constant 0 : index
      %c0_21 = arith.constant 0 : index
      %41 = vector.load %arg5[%c0_20, %c0_21] : memref<8x128xf32, #tpu.memory_space<vmem>>, vector<8x128xf32>
      tpu.vector_store %arg5[%c0_20, %c0_21], %40 {strides = array<i32>} : memref<8x128xf32, #tpu.memory_space<vmem>>, vector<8x128xf32>,
    } else {
    }
    %c0_i32_15 = arith.constant 0 : i32
    %34 = arith.cmpi eq, %arg1, %c0_i32_15 : i32
    %35 = arith.extui %34 : i1 to i32
    %c0_i32_16 = arith.constant 0 : i32
    %36 = arith.cmpi ne, %35, %c0_i32_16 : i32
    scf.if %36 {
      %c0_17 = arith.constant 0 : index
      %c0_18 = arith.constant 0 : index
      %37 = vector.load %arg5[%c0_17, %c0_18] : memref<8x128xf32, #tpu.memory_space<vmem>>, vector<8x128xf32>
      %c0_19 = arith.constant 0 : index
      %c0_20 = arith.constant 0 : index
      %38 = vector.load %arg4[%c0_19, %c0_20] : memref<8x128xf32, #tpu.memory_space<vmem>>, vector<8x128xf32>
      tpu.vector_store %arg4[%c0_19, %c0_20], %37 {strides = array<i32>} : memref<8x128xf32, #tpu.memory_space<vmem>>, vector<8x128xf32>,
    } else {
    }
    return
  }
  func.func @transform_0(%arg0: i32, %arg1: i32) -> (i32, i32) {
    %c1_i32 = arith.constant 1 : i32
    %0 = arith.muli %arg0, %c1_i32 : i32
    %1 = arith.addi %0, %arg1 : i32
    %c0_i32 = arith.constant 0 : i32
    %c0_i32_0 = arith.constant 0 : i32
    return %1, %c0_i32 : i32, i32
  }
  func.func @transform_1(%arg0: i32, %arg1: i32) -> (i32, i32) {
    %c1_i32 = arith.constant 1 : i32
    %0 = arith.muli %arg0, %c1_i32 : i32
    %1 = arith.addi %0, %arg1 : i32
    %c0_i32 = arith.constant 0 : i32
    %c0_i32_0 = arith.constant 0 : i32
    return %1, %c0_i32 : i32, i32
  }
  func.func @transform_2(%arg0: i32, %arg1: i32) -> (i32, i32) {
    %c0_i32 = arith.constant 0 : i32
    %c0_i32_0 = arith.constant 0 : i32
    return %arg0, %c0_i32 : i32, i32
  }
}

</mosaic_0001>

<llo_original>
// kernel: tpu_custom_call.1
$region0: #{tpu_custom_call.1}
  #allocation0 [shape = 'u32[]', space=smem, size = 0x4, offset = 0x4, fixed_abs, tag = 'smem constant byte address 0x4 - core index']
  #allocation1 [shape = 'u32[72,128]{1,0:T(1,128)}', space=vmem, size = 0x9000, scoped, tag = 'internal scratch']
  #allocation2 [shape = 'f32[8,128]{1,0:T(8,128)}', space=vmem, size = 0x1000, scoped, tag = 'scratch operand']
  %s0 = inlined_call_operand.hbm [shape: f32[16,128], index: 0, kind: input, shape index: {}]
  %s1 = inlined_call_operand.hbm [shape: f32[16,128], index: 1, kind: input, shape index: {}]
  %s2 = inlined_call_operand.hbm [shape: f32[8,128], index: 2, kind: output, shape index: {}]
  %s3 = sld [smem:[#allocation0]]
  $region38: #{tpu_custom_call.1} parent=0
    _
  %s5 = ssub.s32 1, %s3
  %s6 = scalar_select 0, %s5, %s3
  $region1: #{tpu_custom_call.1} parent=0
    #allocation3 [shape = 'u8[8192]{0}', space=vmem, size = 0x2000, scoped, tag = 'input window, operand 0, single buffered']
    #allocation4 [shape = 's32[1]{0}', space=sflag, size = 0x4, scoped, tag = 'scoped memory for tpu_custom_call.1']
    #allocation5 [shape = 's32[1]{0}', space=sflag, size = 0x4, scoped, tag = 'scoped memory for tpu_custom_call.1']
    #allocation6 [shape = 'u8[8192]{0}', space=vmem, size = 0x2000, scoped, tag = 'input window, operand 1, single buffered']
    #allocation7 [shape = 's32[1]{0}', space=sflag, size = 0x4, scoped, tag = 'scoped memory for tpu_custom_call.1']
    #allocation8 [shape = 'u8[4096]{0}', space=vmem, size = 0x1000, scoped, tag = 'output window, operand 0, single buffered']
    %7 = vsyncpa [#allocation4], 0
    %8 = vsyncpa [#allocation7], 0
    %9 = vsyncpa [#allocation5], 0
    // Predicated region
    $region2: #{tpu_custom_call.1} parent=1 // pred_check
      _
    $region3: #{tpu_custom_call.1} parent=1 // pred_check_branch
      %11 = sbr.rel (0) target = $region5
    $region4: #{tpu_custom_call.1} parent=1 // pred_region
      %s12 = sadd.s32 0, 0
      %s13 = smul.u32 2, %s12
      %15 = vsyncadd [#allocation4], 0
      %s16 = smul.addr %s13, 8
      %s17 = scalar_lea.hbm %s0, %s16
      %s18 = sshll.u32 %s17, 4
      %s19 = int_to_ptr.hbm [resolvable:$true] %s18
      %s20 = sshll.u32 [#allocation3], 4
      %s21 = int_to_ptr.vmem [resolvable:$true] %s20
      %26 = dma.hbm_to_vmem [thread:$0]  %s19, 256, %s21, [#allocation4], 128, 128, 8
    $region5: #{tpu_custom_call.1} parent=1 // pred_fallthru
      _
    // Predicated region
    $region6: #{tpu_custom_call.1} parent=1 // pred_check
      _
    $region7: #{tpu_custom_call.1} parent=1 // pred_check_branch
      %28 = sbr.rel (0) target = $region9
    $region8: #{tpu_custom_call.1} parent=1 // pred_region
      %s29 = sadd.s32 0, 0
      %s30 = smul.u32 2, %s29
      %32 = vsyncadd [#allocation7], 0
      %s33 = smul.addr %s30, 8
      %s34 = scalar_lea.hbm %s1, %s33
      %s35 = sshll.u32 %s34, 4
      %s36 = int_to_ptr.hbm [resolvable:$true] %s35
      %s37 = sshll.u32 [#allocation6], 4
      %s38 = int_to_ptr.vmem [resolvable:$true] %s37
      %43 = dma.hbm_to_vmem [thread:$0]  %s36, 256, %s38, [#allocation7], 128, 128, 8
    $region9: #{tpu_custom_call.1} parent=1 // pred_fallthru
      _
    // Predicated region
    $region10: #{tpu_custom_call.1} parent=1 // pred_check
      _
    $region11: #{tpu_custom_call.1} parent=1 // pred_check_branch
      %45 = sbr.rel (0) target = $region13
    $region12: #{tpu_custom_call.1} parent=1 // pred_region
      %47 = dma.done [#allocation4], 256
    $region13: #{tpu_custom_call.1} parent=1 // pred_fallthru
      _
    // Predicated region
    $region14: #{tpu_custom_call.1} parent=1 // pred_check
      _
    $region15: #{tpu_custom_call.1} parent=1 // pred_check_branch
      %49 = sbr.rel (0) target = $region17
    $region16: #{tpu_custom_call.1} parent=1 // pred_region
      %51 = dma.done [#allocation7], 256
    $region17: #{tpu_custom_call.1} parent=1 // pred_fallthru
      _
    %s52 = sadd.s32 0, 0
    %s53 = smul.u32 2, %s52
    %s54 = sadd.s32 0, 0
    %s55 = smul.u32 2, %s54
    %s56 = sadd.s32 0, 0
    %p57 = scmp.eq.s32.totalorder 0, 0
    // Predicated region
    $region18: #{tpu_custom_call.1} parent=1 // pred_check
      %p58 = pneg %p57
    $region19: #{tpu_custom_call.1} parent=1 // pred_check_branch
      %60 = sbr.rel (%p58) target = $region21
    $region20: #{tpu_custom_call.1} parent=1 // pred_region
      %61 = vst [vmem:[#allocation2] sm:$0xff] 0.0
    $region21: #{tpu_custom_call.1} parent=1 // pred_fallthru
      _
    %v62 = vld [vmem:[#allocation3] sm:$0xff]
    %v63 = vld [vmem:[#allocation3 + $0x8] sm:$0xff]
    %v64 = vld [vmem:[#allocation6] sm:$0xff]
    %v65 = vld [vmem:[#allocation6 + $0x8] sm:$0xff]
    %vm66 = vcmp.ge.f32.partialorder %v64, 1.0
    %vm67 = vcmp.ge.f32.partialorder %v65, 1.0
    %v68 = vsub.f32 1.0, %v62
    %v69 = vsub.f32 1.0, %v63
    %v70 = vsel %vm66, %v62, %v68
    %v71 = vsel %vm67, %v63, %v69
    %v72 = vmax.f32 %v70, 1e-45
    %v73 = vmax.f32 %v71, 1e-45
    %v74 = vlog2.pop %v72
    %v75 = vmul.f32 %v74, 0.6931472
    %v76 = vlog2.pop %v73
    %v77 = vmul.f32 %v76, 0.6931472
    %v78 = vsub.f32 0.0, %v75
    %v79 = vsub.f32 0.0, %v77
    %v80 = vmin.f32 %v78, 100.0
    %v81 = vmin.f32 %v79, 100.0
    %v82 = vsel %vm66, 0.25, 0.75
    %v83 = vsel %vm67, 0.25, 0.75
    %v84 = vsub.f32 1.0, %v70
    %v85 = vsub.f32 1.0, %v71
    %v86 = vmax.f32 %v84, 0.0
    %v87 = vmax.f32 %v85, 0.0
    %v88 = vmul.f32 %v86, %v86
    %v89 = vmul.f32 %v87, %v87
    %v90 = vmul.f32 %v82, %v88
    %v91 = vmul.f32 %v83, %v89
    %v92 = vmul.f32 %v90, %v80
    %v93 = vmul.f32 %v91, %v81
    %p94 = scmp.lt.s32.totalorder %s56, 1
    // Predicated region
    $region22: #{tpu_custom_call.1} parent=1 // pred_check
      %p95 = pneg %p94
    $region23: #{tpu_custom_call.1} parent=1 // pred_check_branch
      %97 = sbr.rel (%p95) target = $region25
    $region24: #{tpu_custom_call.1} parent=1 // pred_region
      %v98 = vld [vmem:[#allocation2] sm:$0xff]
      %v99 = vadd.f32 %v92, %v93
      %v100 = vadd.f32 %v98, %v99
      %101 = vst [vmem:[#allocation2] sm:$0xff] %v100
    $region25: #{tpu_custom_call.1} parent=1 // pred_fallthru
      _
    // Predicated region
    $region26: #{tpu_custom_call.1} parent=1 // pred_check
      %p102 = pneg %p57
    $region27: #{tpu_custom_call.1} parent=1 // pred_check_branch
      %104 = sbr.rel (%p102) target = $region29
    $region28: #{tpu_custom_call.1} parent=1 // pred_region
      %v105 = vld [vmem:[#allocation2] sm:$0xff]
      %106 = vst [vmem:[#allocation8] sm:$0xff] %v105
    $region29: #{tpu_custom_call.1} parent=1 // pred_fallthru
      _
    // Predicated region
    $region30: #{tpu_custom_call.1} parent=1 // pred_check
      _
    $region31: #{tpu_custom_call.1} parent=1 // pred_check_branch
      %108 = sbr.rel (0) target = $region33
    $region32: #{tpu_custom_call.1} parent=1 // pred_region
      %110 = vsyncadd [#allocation5], 0
      %s112 = sshll.u32 [#allocation8], 4
      %s113 = int_to_ptr.vmem [resolvable:$true] %s112
      %s114 = sshll.u32 %s2, 4
      %s115 = int_to_ptr.hbm [resolvable:$true] %s114
      %117 = dma.vmem_to_hbm [thread:$0]  %s113, 128, %s115, [#allocation5]
    $region33: #{tpu_custom_call.1} parent=1 // pred_fallthru
      _
    // Predicated region
    $region34: #{tpu_custom_call.1} parent=1 // pred_check
      _
    $region35: #{tpu_custom_call.1} parent=1 // pred_check_branch
      %119 = sbr.rel (0) target = $region37
    $region36: #{tpu_custom_call.1} parent=1 // pred_region
      %121 = dma.done [#allocation5], 128
    $region37: #{tpu_custom_call.1} parent=1 // pred_fallthru
      _
    %122 = vsyncpa [#allocation4], 1
    %123 = vsyncpa [#allocation7], 1
    %124 = vsyncpa [#allocation5], 1

</llo_original>
